<compile_context>
chip_gen: v7x
topology: tpu7x:2x2x1
jax: 0.10.0
libtpu: 0.0.40
codegen_flags: <defaults>
</compile_context>

<pallas_src>
import jax
import jax.numpy as jnp
from jax.experimental import pallas as pl
from jax.experimental.pallas import tpu as pltpu

EMBED_DIM = 128
PATCH_SIZE = 16


def _patch_embed_kernel(p_ref, w_ref, b_ref, o_ref):
    # p_ref: (TM, FK)  folded patches (F patches per row, lane-dense FK), in x.dtype
    # w_ref: (FK, FE)  block-diagonal projection weight (FE = F*E), in compute dtype
    # b_ref: (1,  FE)  bias tiled F times, f32
    # o_ref: (TM, FE)  F embeddings per row (lane-dense stores), out dtype
    p = p_ref[...].astype(w_ref.dtype)          # in-kernel cast: no wrapper HBM pass
    acc = jnp.dot(p, w_ref[...], preferred_element_type=jnp.float32)
    o_ref[...] = (acc + b_ref[...]).astype(o_ref.dtype)


def _round_up(x, m):
    return ((x + m - 1) // m) * m


def patch_embedding(x, weight, bias, patch_size=PATCH_SIZE,
                    compute_dtype=jnp.bfloat16, out_dtype=None, tm_rows=2048):
    """Equivalent of PatchEmbedding.forward: Conv1d(k=s=patch_size) then transpose(1, 2).

    x: (B, C, L), weight: (E, C, patch_size), bias: (E,)
    returns: (B, L // patch_size, E) in out_dtype (defaults to compute_dtype).
    """
    B, C, L = x.shape
    E = weight.shape[0]
    assert L % patch_size == 0, "length must be divisible by patch_size"
    P = L // patch_size
    Kdim = C * patch_size
    M = B * P
    out_dtype = compute_dtype if out_dtype is None else out_dtype

    # Lane-dense folding: pad Kdim up to the nearest divisor of 128 (if Kdim <= 128) and
    # pack F = 128 // Kdim_pad consecutive patches per row so the LHS last dim is 128.
    if Kdim <= 128:
        Kdim_pad = Kdim
        while 128 % Kdim_pad != 0:
            Kdim_pad += 1
        F = 128 // Kdim_pad
    else:
        Kdim_pad = Kdim
        F = 1
    FK = F * Kdim_pad
    FE = F * E

    # --- patch extraction (plain JAX glue; free reshape for C == 1, the module default).
    # TODO(synk): for C > 1, fuse the channel relayout into the kernel with a
    #   (1, C, TM*patch_size) BlockSpec window instead of a wrapper transpose.
    patches = x.reshape(B, C, P, patch_size)
    patches = jnp.transpose(patches, (0, 2, 1, 3))            # (B, P, C, K)
    patches = patches.reshape(M, Kdim)

    if Kdim_pad != Kdim:                                      # only when 128 % Kdim != 0
        patches = jnp.pad(patches, ((0, 0), (0, Kdim_pad - Kdim)))

    # Fold F consecutive patches per row; pad rows only if M is not a multiple of F.
    M_rows = pl.cdiv(M, F)
    pad_rows = M_rows * F - M
    if pad_rows:
        patches = jnp.pad(patches, ((0, pad_rows), (0, 0)))
    patches_f = patches.reshape(M_rows, FK)                   # stays in x.dtype (no astype)

    # Block-diagonal weight (FK, FE): W_mat repeated on the diagonal blocks.
    w_mat = weight.reshape(E, Kdim).T                         # (Kdim, E)
    if Kdim_pad != Kdim:
        w_mat = jnp.pad(w_mat, ((0, Kdim_pad - Kdim), (0, 0)))
    w_bd = jnp.kron(jnp.eye(F, dtype=w_mat.dtype), w_mat) if F > 1 else w_mat
    w_bd = w_bd.astype(compute_dtype)
    b_bd = jnp.tile(bias, F).reshape(1, FE).astype(jnp.float32)

    tm = min(_round_up(max(tm_rows, 8), 8), _round_up(M_rows, 8))
    grid = (pl.cdiv(M_rows, tm),)                             # ragged last block is masked

    out = pl.pallas_call(
        _patch_embed_kernel,
        out_shape=jax.ShapeDtypeStruct((M_rows, FE), out_dtype),
        grid_spec=pltpu.PrefetchScalarGridSpec(
            num_scalar_prefetch=0,
            grid=grid,
            in_specs=[
                # streamed operand: double-buffered prefetch across grid steps
                pl.BlockSpec((tm, FK), lambda i: (i, 0)),
                # constant index_map -> fetched once, stays VMEM-resident
                pl.BlockSpec((FK, FE), lambda i: (0, 0)),
                pl.BlockSpec((1, FE), lambda i: (0, 0)),
            ],
            out_specs=pl.BlockSpec((tm, FE), lambda i: (i, 0)),
        ),
        compiler_params=pltpu.CompilerParams(
            # independent M tiles: shard across both TensorCores on v7x
            dimension_semantics=("parallel",),
            # covers f32-output @ tm=2048 on v5e's small scoped default; < v7x physical VMEM
            vmem_limit_bytes=48 * 1024 * 1024,
        ),
    )(patches_f, w_bd, b_bd)

    out = out.reshape(M_rows * F, E)
    if pad_rows:
        out = out[:M]                                         # only when M % F != 0
    return out.reshape(B, P, E)


def _reference(x, weight, bias, patch_size):
    B, C, L = x.shape
    P = L // patch_size
    xp = x.reshape(B, C, P, patch_size).transpose(0, 2, 1, 3)
    return jnp.einsum("bpck,eck->bpe", xp, weight,
                      precision=jax.lax.Precision.HIGHEST) + bias


if __name__ == "__main__":
    key = jax.random.PRNGKey(0)

    def make_inputs(k, B, C, L):
        k_x, k_w, k_b = jax.random.split(k, 3)
        x = jax.random.normal(k_x, (B, C, L), dtype=jnp.float32)
        fan_in = C * PATCH_SIZE
        bound = 1.0 / (fan_in ** 0.5)
        w = jax.random.uniform(k_w, (EMBED_DIM, C, PATCH_SIZE),
                               minval=-bound, maxval=bound, dtype=jnp.float32)
        b = jax.random.uniform(k_b, (EMBED_DIM,),
                               minval=-bound, maxval=bound, dtype=jnp.float32)
        return x, w, b

    # Case 1: module defaults (in_channels=1), small shape, single (sub-block) tile.
    x, w, b = make_inputs(jax.random.fold_in(key, 0), B=2, C=1, L=256)
    ref = _reference(x, w, b, PATCH_SIZE)

    out_f32 = jax.block_until_ready(
        patch_embedding(x, w, b, compute_dtype=jnp.float32))
    assert out_f32.shape == (2, 256 // PATCH_SIZE, EMBED_DIM)
    assert out_f32.dtype == jnp.float32
    assert jnp.allclose(out_f32, ref, atol=1e-4), "f32 path mismatch vs reference"

    # Default bf16 compute + bf16 output path (halves the dominant HBM stream).
    out_bf16 = jax.block_until_ready(patch_embedding(x, w, b))
    assert out_bf16.dtype == jnp.bfloat16
    assert jnp.allclose(out_bf16.astype(jnp.float32), ref, atol=3e-2, rtol=3e-2), \
        "bf16 path mismatch"

    # Case 2: multi-tile grid with a ragged final block (exercises masked loads/stores).
    x, w, b = make_inputs(jax.random.fold_in(key, 1), B=4, C=1, L=4096)
    out = jax.block_until_ready(
        patch_embedding(x, w, b, compute_dtype=jnp.float32, tm_rows=48))
    assert jnp.allclose(out, _reference(x, w, b, PATCH_SIZE), atol=1e-4), \
        "multi-tile / ragged-grid mismatch"

    # Case 3: in_channels > 1 with exact fold (Kdim=32 -> F=4).
    x, w, b = make_inputs(jax.random.fold_in(key, 2), B=2, C=2, L=512)
    out = jax.block_until_ready(
        patch_embedding(x, w, b, compute_dtype=jnp.float32))
    assert jnp.allclose(out, _reference(x, w, b, PATCH_SIZE), atol=1e-4), \
        "C=2 mismatch"

    # Case 4: Kdim does not divide 128 (C=3 -> Kdim=48, padded to 64, F=2) and
    #         M not a multiple of F (exercises the row-pad/trim fallback).
    x, w, b = make_inputs(jax.random.fold_in(key, 3), B=3, C=3, L=240)
    out = jax.block_until_ready(
        patch_embedding(x, w, b, compute_dtype=jnp.float32))
    assert jnp.allclose(out, _reference(x, w, b, PATCH_SIZE), atol=1e-4), \
        "C=3 (padded Kdim) mismatch"

    print("KERNEL_OK")
</pallas_src>

<mosaic_0001>
module attributes {stable_mosaic.version = 11 : i64} {
  func.func @_patch_embed_kernel(%arg0: i32, %arg1: memref<8x128xf32, #tpu.memory_space<vmem>>, %arg2: memref<128x1024xf32, #tpu.memory_space<vmem>>, %arg3: memref<1x1024xf32, #tpu.memory_space<vmem>>, %arg4: memref<8x1024xf32, #tpu.memory_space<vmem>>) attributes {dimension_semantics = [#tpu.dimension_semantics<parallel>], iteration_bounds = array<i64: 1>, scalar_prefetch = 0 : i64, scratch_operands = 0 : i64, tpu.core_type = #tpu.core_type<tc>, window_params = [{transform_indices = @transform_0, window_bounds = array<i64: 8, 128>}, {pipeline_mode = #tpu.pipeline_mode<synchronous>, transform_indices = @transform_1, window_bounds = array<i64: 128, 1024>}, {pipeline_mode = #tpu.pipeline_mode<synchronous>, transform_indices = @transform_2, window_bounds = array<i64: 1, 1024>}, {transform_indices = @transform_3, window_bounds = array<i64: 8, 1024>}]} {
    %c0 = arith.constant 0 : index
    %c0_0 = arith.constant 0 : index
    %0 = vector.load %arg1[%c0, %c0_0] : memref<8x128xf32, #tpu.memory_space<vmem>>, vector<8x128xf32>
    %c0_1 = arith.constant 0 : index
    %c0_2 = arith.constant 0 : index
    %1 = vector.load %arg2[%c0_1, %c0_2] : memref<128x1024xf32, #tpu.memory_space<vmem>>, vector<128x1024xf32>
    %cst = arith.constant dense<0.000000e+00> : vector<8x1024xf32>
    %2 = tpu.matmul %0, %1, %cst {dimension_numbers = #tpu.dot_dimension_numbers<[1], [0], [0], [1], [0, 0, 1, 1], [], []>} : vector<8x128xf32>, vector<128x1024xf32>, vector<8x1024xf32> -> vector<8x1024xf32>
    %c0_3 = arith.constant 0 : index
    %c0_4 = arith.constant 0 : index
    %3 = vector.load %arg3[%c0_3, %c0_4] : memref<1x1024xf32, #tpu.memory_space<vmem>>, vector<1x1024xf32>
    %4 = vector.broadcast %3 : vector<1x1024xf32> to vector<8x1024xf32>
    %5 = arith.addf %2, %4 : vector<8x1024xf32>
    %c0_5 = arith.constant 0 : index
    %c0_6 = arith.constant 0 : index
    %6 = vector.load %arg4[%c0_5, %c0_6] : memref<8x1024xf32, #tpu.memory_space<vmem>>, vector<8x1024xf32>
    tpu.vector_store %arg4[%c0_5, %c0_6], %5 {strides = array<i32>} : memref<8x1024xf32, #tpu.memory_space<vmem>>, vector<8x1024xf32>,
    return
  }
  func.func @transform_0(%arg0: i32) -> (i32, i32) {
    %c0_i32 = arith.constant 0 : i32
    %c0_i32_0 = arith.constant 0 : i32
    return %arg0, %c0_i32 : i32, i32
  }
  func.func @transform_1(%arg0: i32) -> (i32, i32) {
    %c0_i32 = arith.constant 0 : i32
    %c0_i32_0 = arith.constant 0 : i32
    %c0_i32_1 = arith.constant 0 : i32
    return %c0_i32, %c0_i32_0 : i32, i32
  }
  func.func @transform_2(%arg0: i32) -> (i32, i32) {
    %c0_i32 = arith.constant 0 : i32
    %c0_i32_0 = arith.constant 0 : i32
    %c0_i32_1 = arith.constant 0 : i32
    return %c0_i32, %c0_i32_0 : i32, i32
  }
  func.func @transform_3(%arg0: i32) -> (i32, i32) {
    %c0_i32 = arith.constant 0 : i32
    %c0_i32_0 = arith.constant 0 : i32
    return %arg0, %c0_i32 : i32, i32
  }
}

</mosaic_0001>

<llo_original>
// kernel: tpu_custom_call.1
$region0: #{tpu_custom_call.1}
  #allocation0 [shape = 'u32[]', space=smem, size = 0x4, offset = 0x4, fixed_abs, tag = 'smem constant byte address 0x4 - core index']
  #allocation1 [shape = 'u32[144,128]{1,0:T(1,128)}', space=vmem, size = 0x12000, scoped, tag = 'internal scratch']
  %s0 = inlined_call_operand.hbm [shape: f32[4,128], index: 0, kind: input, shape index: {}]
  %s1 = inlined_call_operand.hbm [shape: f32[128,1024], index: 1, kind: input, shape index: {}]
  %s2 = inlined_call_operand.hbm [shape: f32[1,1024], index: 2, kind: input, shape index: {}]
  %s3 = inlined_call_operand.hbm [shape: f32[4,1024], index: 3, kind: output, shape index: {}]
  %s4 = sld [smem:[#allocation0]]
  $region34: #{tpu_custom_call.1} parent=0
    _
  %s6 = ssub.s32 1, %s4
  %s7 = scalar_select 0, %s6, %s4
  $region1: #{tpu_custom_call.1} parent=0
    #allocation2 [shape = 'u8[4096]{0}', space=vmem, size = 0x1000, scoped, tag = 'input window, operand 0, single buffered']
    #allocation3 [shape = 's32[1]{0}', space=sflag, size = 0x4, scoped, tag = 'scoped memory for tpu_custom_call.1']
    #allocation4 [shape = 's32[1]{0}', space=sflag, size = 0x4, scoped, tag = 'scoped memory for tpu_custom_call.1']
    #allocation5 [shape = 'u8[524288]{0}', space=vmem, size = 0x80000, scoped, tag = 'input window, operand 1, single buffered']
    #allocation6 [shape = 's32[1]{0}', space=sflag, size = 0x4, scoped, tag = 'scoped memory for tpu_custom_call.1']
    #allocation7 [shape = 'u8[4096]{0}', space=vmem, size = 0x1000, scoped, tag = 'input window, operand 2, single buffered']
    #allocation8 [shape = 'u8[32768]{0}', space=vmem, size = 0x8000, scoped, tag = 'output window, operand 0, single buffered']
    %8 = vsyncpa [#allocation3], 0
    %9 = vsyncpa [#allocation6], 0
    %10 = vsyncpa [#allocation4], 0
    // Predicated region
    $region2: #{tpu_custom_call.1} parent=1 // pred_check
      _
    $region3: #{tpu_custom_call.1} parent=1 // pred_check_branch
      %12 = sbr.rel (0) target = $region5
    $region4: #{tpu_custom_call.1} parent=1 // pred_region
      %s14 = ssub.s32 128, 64
      %15 = vsyncadd [#allocation3], %s14
      %s16 = sshll.u32 [#allocation2], 4
      %s17 = int_to_ptr.vmem [resolvable:$true] %s16
      %22 = dma.hbm_to_vmem [thread:$0]  %s0, 64, %s17, [#allocation3], 64, 64, 4
    $region5: #{tpu_custom_call.1} parent=1 // pred_fallthru
      _
    // Predicated region
    $region6: #{tpu_custom_call.1} parent=1 // pred_check
      _
    $region7: #{tpu_custom_call.1} parent=1 // pred_check_branch
      %24 = sbr.rel (0) target = $region9
    $region8: #{tpu_custom_call.1} parent=1 // pred_region
      %s26 = ssub.s32 16384, 16384
      %27 = vsyncadd [#allocation6], %s26
      %s28 = sshll.u32 [#allocation5], 4
      %s29 = int_to_ptr.vmem [resolvable:$true] %s28
      %34 = dma.hbm_to_vmem [thread:$0]  %s1, 16384, %s29, [#allocation6], 1024, 1024, 64
    $region9: #{tpu_custom_call.1} parent=1 // pred_fallthru
      _
    // Predicated region
    $region10: #{tpu_custom_call.1} parent=1 // pred_check
      _
    $region11: #{tpu_custom_call.1} parent=1 // pred_check_branch
      %36 = sbr.rel (0) target = $region13
    $region12: #{tpu_custom_call.1} parent=1 // pred_region
      %s38 = ssub.s32 128, 128
      %39 = vsyncadd [#allocation6], %s38
      %s41 = sshll.u32 [#allocation7], 4
      %s42 = int_to_ptr.vmem [resolvable:$true] %s41
      %44 = dma.hbm_to_vmem [thread:$0]  %s2, 128, %s42, [#allocation6]
    $region13: #{tpu_custom_call.1} parent=1 // pred_fallthru
      _
    // Predicated region
    $region14: #{tpu_custom_call.1} parent=1 // pred_check
      _
    $region15: #{tpu_custom_call.1} parent=1 // pred_check_branch
      %46 = sbr.rel (0) target = $region17
    $region16: #{tpu_custom_call.1} parent=1 // pred_region
      %47 = dma.done [#allocation3], 128
    $region17: #{tpu_custom_call.1} parent=1 // pred_fallthru
      _
    // Predicated region
    $region18: #{tpu_custom_call.1} parent=1 // pred_check
      _
    $region19: #{tpu_custom_call.1} parent=1 // pred_check_branch
      %49 = sbr.rel (0) target = $region21
    $region20: #{tpu_custom_call.1} parent=1 // pred_region
      %50 = dma.done [#allocation6], 16384
    $region21: #{tpu_custom_call.1} parent=1 // pred_fallthru
      _
    // Predicated region
    $region22: #{tpu_custom_call.1} parent=1 // pred_check
      _
    $region23: #{tpu_custom_call.1} parent=1 // pred_check_branch
      %52 = sbr.rel (0) target = $region25
    $region24: #{tpu_custom_call.1} parent=1 // pred_region
      %53 = dma.done [#allocation6], 128
    $region25: #{tpu_custom_call.1} parent=1 // pred_fallthru
      _
    %v54 = vld [vmem:[#allocation2] sm:$0xff]
    %v55 = vld [vmem:[#allocation5] sm:$0xff]
    %v56 = vld [vmem:[#allocation5 + $0x8] sm:$0xff]
    %v57 = vld [vmem:[#allocation5 + $0x10] sm:$0xff]
    %v58 = vld [vmem:[#allocation5 + $0x18] sm:$0xff]
    %v59 = vld [vmem:[#allocation5 + $0x20] sm:$0xff]
    %v60 = vld [vmem:[#allocation5 + $0x28] sm:$0xff]
    %v61 = vld [vmem:[#allocation5 + $0x30] sm:$0xff]
    %v62 = vld [vmem:[#allocation5 + $0x38] sm:$0xff]
    %v63 = vld [vmem:[#allocation5 + $0x40] sm:$0xff]
    %v64 = vld [vmem:[#allocation5 + $0x48] sm:$0xff]
    %v65 = vld [vmem:[#allocation5 + $0x50] sm:$0xff]
    %v66 = vld [vmem:[#allocation5 + $0x58] sm:$0xff]
    %v67 = vld [vmem:[#allocation5 + $0x60] sm:$0xff]
    %v68 = vld [vmem:[#allocation5 + $0x68] sm:$0xff]
    %v69 = vld [vmem:[#allocation5 + $0x70] sm:$0xff]
    %v70 = vld [vmem:[#allocation5 + $0x78] sm:$0xff]
    %v71 = vld [vmem:[#allocation5 + $0x80] sm:$0xff]
    %v72 = vld [vmem:[#allocation5 + $0x88] sm:$0xff]
    %v73 = vld [vmem:[#allocation5 + $0x90] sm:$0xff]
    %v74 = vld [vmem:[#allocation5 + $0x98] sm:$0xff]
    %v75 = vld [vmem:[#allocation5 + $0xa0] sm:$0xff]
    %v76 = vld [vmem:[#allocation5 + $0xa8] sm:$0xff]
    %v77 = vld [vmem:[#allocation5 + $0xb0] sm:$0xff]
    %v78 = vld [vmem:[#allocation5 + $0xb8] sm:$0xff]
    %v79 = vld [vmem:[#allocation5 + $0xc0] sm:$0xff]
    %v80 = vld [vmem:[#allocation5 + $0xc8] sm:$0xff]
    %v81 = vld [vmem:[#allocation5 + $0xd0] sm:$0xff]
    %v82 = vld [vmem:[#allocation5 + $0xd8] sm:$0xff]
    %v83 = vld [vmem:[#allocation5 + $0xe0] sm:$0xff]
    %v84 = vld [vmem:[#allocation5 + $0xe8] sm:$0xff]
    %v85 = vld [vmem:[#allocation5 + $0xf0] sm:$0xff]
    %v86 = vld [vmem:[#allocation5 + $0xf8] sm:$0xff]
    %v87 = vld [vmem:[#allocation5 + $0x100] sm:$0xff]
    %v88 = vld [vmem:[#allocation5 + $0x108] sm:$0xff]
    %v89 = vld [vmem:[#allocation5 + $0x110] sm:$0xff]
    %v90 = vld [vmem:[#allocation5 + $0x118] sm:$0xff]
    %v91 = vld [vmem:[#allocation5 + $0x120] sm:$0xff]
    %v92 = vld [vmem:[#allocation5 + $0x128] sm:$0xff]
    %v93 = vld [vmem:[#allocation5 + $0x130] sm:$0xff]
    %v94 = vld [vmem:[#allocation5 + $0x138] sm:$0xff]
    %v95 = vld [vmem:[#allocation5 + $0x140] sm:$0xff]
    %v96 = vld [vmem:[#allocation5 + $0x148] sm:$0xff]
    %v97 = vld [vmem:[#allocation5 + $0x150] sm:$0xff]
    %v98 = vld [vmem:[#allocation5 + $0x158] sm:$0xff]
    %v99 = vld [vmem:[#allocation5 + $0x160] sm:$0xff]
    %v100 = vld [vmem:[#allocation5 + $0x168] sm:$0xff]
    %v101 = vld [vmem:[#allocation5 + $0x170] sm:$0xff]
    %v102 = vld [vmem:[#allocation5 + $0x178] sm:$0xff]
    %v103 = vld [vmem:[#allocation5 + $0x180] sm:$0xff]
    %v104 = vld [vmem:[#allocation5 + $0x188] sm:$0xff]
    %v105 = vld [vmem:[#allocation5 + $0x190] sm:$0xff]
    %v106 = vld [vmem:[#allocation5 + $0x198] sm:$0xff]
    %v107 = vld [vmem:[#allocation5 + $0x1a0] sm:$0xff]
    %v108 = vld [vmem:[#allocation5 + $0x1a8] sm:$0xff]
    %v109 = vld [vmem:[#allocation5 + $0x1b0] sm:$0xff]
    %v110 = vld [vmem:[#allocation5 + $0x1b8] sm:$0xff]
    %v111 = vld [vmem:[#allocation5 + $0x1c0] sm:$0xff]
    %v112 = vld [vmem:[#allocation5 + $0x1c8] sm:$0xff]
    %v113 = vld [vmem:[#allocation5 + $0x1d0] sm:$0xff]
    %v114 = vld [vmem:[#allocation5 + $0x1d8] sm:$0xff]
    %v115 = vld [vmem:[#allocation5 + $0x1e0] sm:$0xff]
    %v116 = vld [vmem:[#allocation5 + $0x1e8] sm:$0xff]
    %v117 = vld [vmem:[#allocation5 + $0x1f0] sm:$0xff]
    %v118 = vld [vmem:[#allocation5 + $0x1f8] sm:$0xff]
    %v119 = vld [vmem:[#allocation5 + $0x200] sm:$0xff]
    %v120 = vld [vmem:[#allocation5 + $0x208] sm:$0xff]
    %v121 = vld [vmem:[#allocation5 + $0x210] sm:$0xff]
    %v122 = vld [vmem:[#allocation5 + $0x218] sm:$0xff]
    %v123 = vld [vmem:[#allocation5 + $0x220] sm:$0xff]
    %v124 = vld [vmem:[#allocation5 + $0x228] sm:$0xff]
    %v125 = vld [vmem:[#allocation5 + $0x230] sm:$0xff]
    %v126 = vld [vmem:[#allocation5 + $0x238] sm:$0xff]
    %v127 = vld [vmem:[#allocation5 + $0x240] sm:$0xff]
    %v128 = vld [vmem:[#allocation5 + $0x248] sm:$0xff]
    %v129 = vld [vmem:[#allocation5 + $0x250] sm:$0xff]
    %v130 = vld [vmem:[#allocation5 + $0x258] sm:$0xff]
    %v131 = vld [vmem:[#allocation5 + $0x260] sm:$0xff]
    %v132 = vld [vmem:[#allocation5 + $0x268] sm:$0xff]
    %v133 = vld [vmem:[#allocation5 + $0x270] sm:$0xff]
    %v134 = vld [vmem:[#allocation5 + $0x278] sm:$0xff]
    %v135 = vld [vmem:[#allocation5 + $0x280] sm:$0xff]
    %v136 = vld [vmem:[#allocation5 + $0x288] sm:$0xff]
    %v137 = vld [vmem:[#allocation5 + $0x290] sm:$0xff]
    %v138 = vld [vmem:[#allocation5 + $0x298] sm:$0xff]
    %v139 = vld [vmem:[#allocation5 + $0x2a0] sm:$0xff]
    %v140 = vld [vmem:[#allocation5 + $0x2a8] sm:$0xff]
    %v141 = vld [vmem:[#allocation5 + $0x2b0] sm:$0xff]
    %v142 = vld [vmem:[#allocation5 + $0x2b8] sm:$0xff]
    %v143 = vld [vmem:[#allocation5 + $0x2c0] sm:$0xff]
    %v144 = vld [vmem:[#allocation5 + $0x2c8] sm:$0xff]
    %v145 = vld [vmem:[#allocation5 + $0x2d0] sm:$0xff]
    %v146 = vld [vmem:[#allocation5 + $0x2d8] sm:$0xff]
    %v147 = vld [vmem:[#allocation5 + $0x2e0] sm:$0xff]
    %v148 = vld [vmem:[#allocation5 + $0x2e8] sm:$0xff]
    %v149 = vld [vmem:[#allocation5 + $0x2f0] sm:$0xff]
    %v150 = vld [vmem:[#allocation5 + $0x2f8] sm:$0xff]
    %v151 = vld [vmem:[#allocation5 + $0x300] sm:$0xff]
    %v152 = vld [vmem:[#allocation5 + $0x308] sm:$0xff]
    %v153 = vld [vmem:[#allocation5 + $0x310] sm:$0xff]
    %v154 = vld [vmem:[#allocation5 + $0x318] sm:$0xff]
    %v155 = vld [vmem:[#allocation5 + $0x320] sm:$0xff]
    %v156 = vld [vmem:[#allocation5 + $0x328] sm:$0xff]
    %v157 = vld [vmem:[#allocation5 + $0x330] sm:$0xff]
    %v158 = vld [vmem:[#allocation5 + $0x338] sm:$0xff]
    %v159 = vld [vmem:[#allocation5 + $0x340] sm:$0xff]
    %v160 = vld [vmem:[#allocation5 + $0x348] sm:$0xff]
    %v161 = vld [vmem:[#allocation5 + $0x350] sm:$0xff]
    %v162 = vld [vmem:[#allocation5 + $0x358] sm:$0xff]
    %v163 = vld [vmem:[#allocation5 + $0x360] sm:$0xff]
    %v164 = vld [vmem:[#allocation5 + $0x368] sm:$0xff]
    %v165 = vld [vmem:[#allocation5 + $0x370] sm:$0xff]
    %v166 = vld [vmem:[#allocation5 + $0x378] sm:$0xff]
    %v167 = vld [vmem:[#allocation5 + $0x380] sm:$0xff]
    %v168 = vld [vmem:[#allocation5 + $0x388] sm:$0xff]
    %v169 = vld [vmem:[#allocation5 + $0x390] sm:$0xff]
    %v170 = vld [vmem:[#allocation5 + $0x398] sm:$0xff]
    %v171 = vld [vmem:[#allocation5 + $0x3a0] sm:$0xff]
    %v172 = vld [vmem:[#allocation5 + $0x3a8] sm:$0xff]
    %v173 = vld [vmem:[#allocation5 + $0x3b0] sm:$0xff]
    %v174 = vld [vmem:[#allocation5 + $0x3b8] sm:$0xff]
    %v175 = vld [vmem:[#allocation5 + $0x3c0] sm:$0xff]
    %v176 = vld [vmem:[#allocation5 + $0x3c8] sm:$0xff]
    %v177 = vld [vmem:[#allocation5 + $0x3d0] sm:$0xff]
    %v178 = vld [vmem:[#allocation5 + $0x3d8] sm:$0xff]
    %v179 = vld [vmem:[#allocation5 + $0x3e0] sm:$0xff]
    %v180 = vld [vmem:[#allocation5 + $0x3e8] sm:$0xff]
    %v181 = vld [vmem:[#allocation5 + $0x3f0] sm:$0xff]
    %v182 = vld [vmem:[#allocation5 + $0x3f8] sm:$0xff]
    %v183 = vld [vmem:[#allocation7] sm:$0xff]
    %v185 = vlaneseq
    %v186 = vshrl.u32 %v185, 7
    %v187 = vsub.s32 0, %v186
    %v188 = vrot.slane %v183, %v187
    %v189 = vlaneseq
    %v190 = vshrl.u32 %v189, 7
    %v191 = vsub.s32 1, %v190
    %v192 = vrot.slane %v183, %v191
    %v193 = vlaneseq
    %v194 = vshrl.u32 %v193, 7
    %v195 = vsub.s32 2, %v194
    %v196 = vrot.slane %v183, %v195
    %v197 = vlaneseq
    %v198 = vshrl.u32 %v197, 7
    %v199 = vsub.s32 3, %v198
    %v200 = vrot.slane %v183, %v199
    %v201 = vlaneseq
    %v202 = vshrl.u32 %v201, 7
    %v203 = vsub.s32 4, %v202
    %v204 = vrot.slane %v183, %v203
    %v205 = vlaneseq
    %v206 = vshrl.u32 %v205, 7
    %v207 = vsub.s32 5, %v206
    %v208 = vrot.slane %v183, %v207
    %v209 = vlaneseq
    %v210 = vshrl.u32 %v209, 7
    %v211 = vsub.s32 6, %v210
    %v212 = vrot.slane %v183, %v211
    %v213 = vlaneseq
    %v214 = vshrl.u32 %v213, 7
    %v215 = vsub.s32 7, %v214
    %v216 = vrot.slane %v183, %v215
    %225 = vmatprep.subr.mxu0 %v56
    %226 = vmatpush1.msra.mxu0 %v55
    %227 = vmatprep.subr.mxu0 %v64
    %228 = vmatpush1.msra.mxu0 %v63
    %229 = vmatprep.subr.mxu0 %v72
    %230 = vmatpush1.msra.mxu0 %v71
    %231 = vmatprep.subr.mxu0 %v80
    %232 = vmatpush1.msra.mxu0 %v79
    %233 = vmatprep.subr.mxu0 %v88
    %234 = vmatpush1.msra.mxu0 %v87
    %235 = vmatprep.subr.mxu0 %v96
    %236 = vmatpush1.msra.mxu0 %v95
    %237 = vmatprep.subr.mxu0 %v104
    %238 = vmatpush1.msra.mxu0 %v103
    %239 = vmatprep.subr.mxu0 %v112
    %240 = vmatpush1.msra.mxu0 %v111
    %241 = vmatprep.subr.mxu0 %v120
    %242 = vmatpush1.msra.mxu0 %v119
    %243 = vmatprep.subr.mxu0 %v128
    %244 = vmatpush1.msra.mxu0 %v127
    %245 = vmatprep.subr.mxu0 %v136
    %246 = vmatpush1.msra.mxu0 %v135
    %247 = vmatprep.subr.mxu0 %v144
    %248 = vmatpush1.msra.mxu0 %v143
    %249 = vmatprep.subr.mxu0 %v152
    %250 = vmatpush1.msra.mxu0 %v151
    %251 = vmatprep.subr.mxu0 %v160
    %252 = vmatpush1.msra.mxu0 %v159
    %253 = vmatprep.subr.mxu0 %v168
    %254 = vmatpush1.msra.mxu0 %v167
    %255 = vmatprep.subr.mxu0 %v176
    %256 = vmatpush1.msra.mxu0 %v175
    %257 = vmatprep.subr.mxu0 0.0
    %258 = vmatpush1.msra.mxu0 0.0
    %259 = vmatprep.subr.mxu0 0.0
    %260 = vmatpush1.msra.mxu0 0.0
    %261 = vmatprep.subr.mxu0 0.0
    %262 = vmatpush1.msra.mxu0 0.0
    %263 = vmatprep.subr.mxu0 0.0
    %264 = vmatpush1.msra.mxu0 0.0
    %265 = vmatprep.subr.mxu0 0.0
    %266 = vmatpush1.msra.mxu0 0.0
    %267 = vmatprep.subr.mxu0 0.0
    %268 = vmatpush1.msra.mxu0 0.0
    %269 = vmatprep.subr.mxu0 0.0
    %270 = vmatpush1.msra.mxu0 0.0
    %271 = vmatprep.subr.mxu0 0.0
    %272 = vmatpush1.msra.mxu0 0.0
    %273 = vmatprep.subr.mxu0 0.0
    %274 = vmatpush1.msra.mxu0 0.0
    %275 = vmatprep.subr.mxu0 0.0
    %276 = vmatpush1.msra.mxu0 0.0
    %277 = vmatprep.subr.mxu0 0.0
    %278 = vmatpush1.msra.mxu0 0.0
    %279 = vmatprep.subr.mxu0 0.0
    %280 = vmatpush1.msra.mxu0 0.0
    %281 = vmatprep.subr.mxu0 0.0
    %282 = vmatpush1.msra.mxu0 0.0
    %283 = vmatprep.subr.mxu0 0.0
    %284 = vmatpush1.msra.mxu0 0.0
    %285 = vmatprep.subr.mxu0 0.0
    %286 = vmatpush1.msra.mxu0 0.0
    %287 = vmatprep.subr.mxu0 0.0
    %288 = vmatpush1.msra.mxu0 0.0
    %289 = vmatprep.mubr.f32.mxu0 0.0
    %290 = vmatmul.mubr.f32.gmra.mrb[0].mxu0 %v54
    %v291 = vpop.f32.mrb[0].mxu0
    %v292 = vadd.f32 %v188, %v291
    %v293 = vpop.f32.mrb[0].mxu0
    %v294 = vadd.f32 %v192, %v293
    %295 = vdwg.mxu0
    %296 = vmatprep.subr.mxu0 %v58
    %297 = vmatpush1.msra.mxu0 %v57
    %298 = vmatprep.subr.mxu0 %v66
    %299 = vmatpush1.msra.mxu0 %v65
    %300 = vmatprep.subr.mxu0 %v74
    %301 = vmatpush1.msra.mxu0 %v73
    %302 = vmatprep.subr.mxu0 %v82
    %303 = vmatpush1.msra.mxu0 %v81
    %304 = vmatprep.subr.mxu0 %v90
    %305 = vmatpush1.msra.mxu0 %v89
    %306 = vmatprep.subr.mxu0 %v98
    %307 = vmatpush1.msra.mxu0 %v97
    %308 = vmatprep.subr.mxu0 %v106
    %309 = vmatpush1.msra.mxu0 %v105
    %310 = vmatprep.subr.mxu0 %v114
    %311 = vmatpush1.msra.mxu0 %v113
    %312 = vmatprep.subr.mxu0 %v122
    %313 = vmatpush1.msra.mxu0 %v121
    %314 = vmatprep.subr.mxu0 %v130
    %315 = vmatpush1.msra.mxu0 %v129
    %316 = vmatprep.subr.mxu0 %v138
    %317 = vmatpush1.msra.mxu0 %v137
    %318 = vmatprep.subr.mxu0 %v146
    %319 = vmatpush1.msra.mxu0 %v145
    %320 = vmatprep.subr.mxu0 %v154
    %321 = vmatpush1.msra.mxu0 %v153
    %322 = vmatprep.subr.mxu0 %v162
    %323 = vmatpush1.msra.mxu0 %v161
    %324 = vmatprep.subr.mxu0 %v170
    %325 = vmatpush1.msra.mxu0 %v169
    %326 = vmatprep.subr.mxu0 %v178
    %327 = vmatpush1.msra.mxu0 %v177
    %328 = vmatprep.subr.mxu0 0.0
    %329 = vmatpush1.msra.mxu0 0.0
    %330 = vmatprep.subr.mxu0 0.0
    %331 = vmatpush1.msra.mxu0 0.0
    %332 = vmatprep.subr.mxu0 0.0
    %333 = vmatpush1.msra.mxu0 0.0
    %334 = vmatprep.subr.mxu0 0.0
    %335 = vmatpush1.msra.mxu0 0.0
    %336 = vmatprep.subr.mxu0 0.0
    %337 = vmatpush1.msra.mxu0 0.0
    %338 = vmatprep.subr.mxu0 0.0
    %339 = vmatpush1.msra.mxu0 0.0
    %340 = vmatprep.subr.mxu0 0.0
    %341 = vmatpush1.msra.mxu0 0.0
    %342 = vmatprep.subr.mxu0 0.0
    %343 = vmatpush1.msra.mxu0 0.0
    %344 = vmatprep.subr.mxu0 0.0
    %345 = vmatpush1.msra.mxu0 0.0
    %346 = vmatprep.subr.mxu0 0.0
    %347 = vmatpush1.msra.mxu0 0.0
    %348 = vmatprep.subr.mxu0 0.0
    %349 = vmatpush1.msra.mxu0 0.0
    %350 = vmatprep.subr.mxu0 0.0
    %351 = vmatpush1.msra.mxu0 0.0
    %352 = vmatprep.subr.mxu0 0.0
    %353 = vmatpush1.msra.mxu0 0.0
    %354 = vmatprep.subr.mxu0 0.0
    %355 = vmatpush1.msra.mxu0 0.0
    %356 = vmatprep.subr.mxu0 0.0
    %357 = vmatpush1.msra.mxu0 0.0
    %358 = vmatprep.subr.mxu0 0.0
    %359 = vmatpush1.msra.mxu0 0.0
    %360 = vmatprep.mubr.f32.mxu0 0.0
    %361 = vmatmul.mubr.f32.gmra.mrb[0].mxu0 %v54
    %v362 = vpop.f32.mrb[0].mxu0
    %v363 = vadd.f32 %v196, %v362
    %v364 = vpop.f32.mrb[0].mxu0
    %v365 = vadd.f32 %v200, %v364
    %366 = vdwg.mxu0
    %367 = vmatprep.subr.mxu0 %v60
    %368 = vmatpush1.msra.mxu0 %v59
    %369 = vmatprep.subr.mxu0 %v68
    %370 = vmatpush1.msra.mxu0 %v67
    %371 = vmatprep.subr.mxu0 %v76
    %372 = vmatpush1.msra.mxu0 %v75
    %373 = vmatprep.subr.mxu0 %v84
    %374 = vmatpush1.msra.mxu0 %v83
    %375 = vmatprep.subr.mxu0 %v92
    %376 = vmatpush1.msra.mxu0 %v91
    %377 = vmatprep.subr.mxu0 %v100
    %378 = vmatpush1.msra.mxu0 %v99
    %379 = vmatprep.subr.mxu0 %v108
    %380 = vmatpush1.msra.mxu0 %v107
    %381 = vmatprep.subr.mxu0 %v116
    %382 = vmatpush1.msra.mxu0 %v115
    %383 = vmatprep.subr.mxu0 %v124
    %384 = vmatpush1.msra.mxu0 %v123
    %385 = vmatprep.subr.mxu0 %v132
    %386 = vmatpush1.msra.mxu0 %v131
    %387 = vmatprep.subr.mxu0 %v140
    %388 = vmatpush1.msra.mxu0 %v139
    %389 = vmatprep.subr.mxu0 %v148
    %390 = vmatpush1.msra.mxu0 %v147
    %391 = vmatprep.subr.mxu0 %v156
    %392 = vmatpush1.msra.mxu0 %v155
    %393 = vmatprep.subr.mxu0 %v164
    %394 = vmatpush1.msra.mxu0 %v163
    %395 = vmatprep.subr.mxu0 %v172
    %396 = vmatpush1.msra.mxu0 %v171
    %397 = vmatprep.subr.mxu0 %v180
    %398 = vmatpush1.msra.mxu0 %v179
    %399 = vmatprep.subr.mxu0 0.0
    %400 = vmatpush1.msra.mxu0 0.0
    %401 = vmatprep.subr.mxu0 0.0
    %402 = vmatpush1.msra.mxu0 0.0
    %403 = vmatprep.subr.mxu0 0.0
    %404 = vmatpush1.msra.mxu0 0.0
    %405 = vmatprep.subr.mxu0 0.0
    %406 = vmatpush1.msra.mxu0 0.0
    %407 = vmatprep.subr.mxu0 0.0
    %408 = vmatpush1.msra.mxu0 0.0
    %409 = vmatprep.subr.mxu0 0.0
    %410 = vmatpush1.msra.mxu0 0.0
    %411 = vmatprep.subr.mxu0 0.0
    %412 = vmatpush1.msra.mxu0 0.0
    %413 = vmatprep.subr.mxu0 0.0
    %414 = vmatpush1.msra.mxu0 0.0
    %415 = vmatprep.subr.mxu0 0.0
    %416 = vmatpush1.msra.mxu0 0.0
    %417 = vmatprep.subr.mxu0 0.0
    %418 = vmatpush1.msra.mxu0 0.0
    %419 = vmatprep.subr.mxu0 0.0
    %420 = vmatpush1.msra.mxu0 0.0
    %421 = vmatprep.subr.mxu0 0.0
    %422 = vmatpush1.msra.mxu0 0.0
    %423 = vmatprep.subr.mxu0 0.0
    %424 = vmatpush1.msra.mxu0 0.0
    %425 = vmatprep.subr.mxu0 0.0
    %426 = vmatpush1.msra.mxu0 0.0
    %427 = vmatprep.subr.mxu0 0.0
    %428 = vmatpush1.msra.mxu0 0.0
    %429 = vmatprep.subr.mxu0 0.0
    %430 = vmatpush1.msra.mxu0 0.0
    %431 = vmatprep.mubr.f32.mxu0 0.0
    %432 = vmatmul.mubr.f32.gmra.mrb[0].mxu0 %v54
    %v433 = vpop.f32.mrb[0].mxu0
    %v434 = vadd.f32 %v204, %v433
    %v435 = vpop.f32.mrb[0].mxu0
    %v436 = vadd.f32 %v208, %v435
    %437 = vdwg.mxu0
    %438 = vmatprep.subr.mxu0 %v62
    %439 = vmatpush1.msra.mxu0 %v61
    %440 = vmatprep.subr.mxu0 %v70
    %441 = vmatpush1.msra.mxu0 %v69
    %442 = vmatprep.subr.mxu0 %v78
    %443 = vmatpush1.msra.mxu0 %v77
    %444 = vmatprep.subr.mxu0 %v86
    %445 = vmatpush1.msra.mxu0 %v85
    %446 = vmatprep.subr.mxu0 %v94
    %447 = vmatpush1.msra.mxu0 %v93
    %448 = vmatprep.subr.mxu0 %v102
    %449 = vmatpush1.msra.mxu0 %v101
    %450 = vmatprep.subr.mxu0 %v110
    %451 = vmatpush1.msra.mxu0 %v109
    %452 = vmatprep.subr.mxu0 %v118
    %453 = vmatpush1.msra.mxu0 %v117
    %454 = vmatprep.subr.mxu0 %v126
    %455 = vmatpush1.msra.mxu0 %v125
    %456 = vmatprep.subr.mxu0 %v134
    %457 = vmatpush1.msra.mxu0 %v133
    %458 = vmatprep.subr.mxu0 %v142
    %459 = vmatpush1.msra.mxu0 %v141
    %460 = vmatprep.subr.mxu0 %v150
    %461 = vmatpush1.msra.mxu0 %v149
    %462 = vmatprep.subr.mxu0 %v158
    %463 = vmatpush1.msra.mxu0 %v157
    %464 = vmatprep.subr.mxu0 %v166
    %465 = vmatpush1.msra.mxu0 %v165
    %466 = vmatprep.subr.mxu0 %v174
    %467 = vmatpush1.msra.mxu0 %v173
    %468 = vmatprep.subr.mxu0 %v182
    %469 = vmatpush1.msra.mxu0 %v181
    %470 = vmatprep.subr.mxu0 0.0
    %471 = vmatpush1.msra.mxu0 0.0
    %472 = vmatprep.subr.mxu0 0.0
    %473 = vmatpush1.msra.mxu0 0.0
    %474 = vmatprep.subr.mxu0 0.0
    %475 = vmatpush1.msra.mxu0 0.0
    %476 = vmatprep.subr.mxu0 0.0
    %477 = vmatpush1.msra.mxu0 0.0
    %478 = vmatprep.subr.mxu0 0.0
    %479 = vmatpush1.msra.mxu0 0.0
    %480 = vmatprep.subr.mxu0 0.0
    %481 = vmatpush1.msra.mxu0 0.0
    %482 = vmatprep.subr.mxu0 0.0
    %483 = vmatpush1.msra.mxu0 0.0
    %484 = vmatprep.subr.mxu0 0.0
    %485 = vmatpush1.msra.mxu0 0.0
    %486 = vmatprep.subr.mxu0 0.0
    %487 = vmatpush1.msra.mxu0 0.0
    %488 = vmatprep.subr.mxu0 0.0
    %489 = vmatpush1.msra.mxu0 0.0
    %490 = vmatprep.subr.mxu0 0.0
    %491 = vmatpush1.msra.mxu0 0.0
    %492 = vmatprep.subr.mxu0 0.0
    %493 = vmatpush1.msra.mxu0 0.0
    %494 = vmatprep.subr.mxu0 0.0
    %495 = vmatpush1.msra.mxu0 0.0
    %496 = vmatprep.subr.mxu0 0.0
    %497 = vmatpush1.msra.mxu0 0.0
    %498 = vmatprep.subr.mxu0 0.0
    %499 = vmatpush1.msra.mxu0 0.0
    %500 = vmatprep.subr.mxu0 0.0
    %501 = vmatpush1.msra.mxu0 0.0
    %502 = vmatprep.mubr.f32.mxu0 0.0
    %503 = vmatmul.mubr.f32.gmra.mrb[0].mxu0 %v54
    %v504 = vpop.f32.mrb[0].mxu0
    %v505 = vadd.f32 %v212, %v504
    %v506 = vpop.f32.mrb[0].mxu0
    %v507 = vadd.f32 %v216, %v506
    %508 = vdwg.mxu0
    %v517 = vcombine.low %v292, %v294
    %v518 = vcombine.high %v292, %v294
    %v519 = vcombine.low %v363, %v365
    %v520 = vcombine.high %v363, %v365
    %v521 = vcombine.low %v434, %v436
    %v522 = vcombine.high %v434, %v436
    %v523 = vcombine.low %v505, %v507
    %v524 = vcombine.high %v505, %v507
    %533 = vst [vmem:[#allocation8] sm:$0xff] %v517
    %534 = vst [vmem:[#allocation8 + $0x8] sm:$0xff] %v519
    %535 = vst [vmem:[#allocation8 + $0x10] sm:$0xff] %v521
    %536 = vst [vmem:[#allocation8 + $0x18] sm:$0xff] %v523
    %537 = vst [vmem:[#allocation8 + $0x20] sm:$0xff] %v518
    %538 = vst [vmem:[#allocation8 + $0x28] sm:$0xff] %v520
    %539 = vst [vmem:[#allocation8 + $0x30] sm:$0xff] %v522
    %540 = vst [vmem:[#allocation8 + $0x38] sm:$0xff] %v524
    // Predicated region
    $region26: #{tpu_custom_call.1} parent=1 // pred_check
      _
    $region27: #{tpu_custom_call.1} parent=1 // pred_check_branch
      %542 = sbr.rel (0) target = $region29
    $region28: #{tpu_custom_call.1} parent=1 // pred_region
      %s544 = ssub.s32 1024, 512
      %545 = vsyncadd [#allocation4], %s544
      %s546 = sshll.u32 [#allocation8], 4
      %s547 = int_to_ptr.vmem [resolvable:$true] %s546
      %552 = dma.vmem_to_hbm [thread:$0]  %s547, 512, %s3, [#allocation4], 512, 512, 32
    $region29: #{tpu_custom_call.1} parent=1 // pred_fallthru
      _
    // Predicated region
    $region30: #{tpu_custom_call.1} parent=1 // pred_check
      _
    $region31: #{tpu_custom_call.1} parent=1 // pred_check_branch
      %554 = sbr.rel (0) target = $region33
    $region32: #{tpu_custom_call.1} parent=1 // pred_region
      %555 = dma.done [#allocation4], 1024
    $region33: #{tpu_custom_call.1} parent=1 // pred_fallthru
      _
    %556 = vsyncpa [#allocation3], 1
    %557 = vsyncpa [#allocation6], 1
    %558 = vsyncpa [#allocation4], 1

</llo_original>
